<compile_context>
chip_gen: v7x
topology: tpu7x:2x2x1
jax: 0.10.0
libtpu: 0.0.40
codegen_flags: <defaults>
</compile_context>

<pallas_src>
import jax
import jax.numpy as jnp
from jax import lax
from jax.experimental import pallas as pl
from jax.experimental.pallas import tpu as pltpu

_VMEM_LIMIT = 64 * 1024 * 1024  # fits v7x's 64 MiB physical VMEM; generous on v5e/v6e


# ---------------- Pallas kernels ----------------

def _matmul_bias_kernel(x_ref, w_ref, b_ref, o_ref):
    # x: (tm, K), w: (K, N), b: (1, N) -> o: (tm, N)     (1x1 conv as matmul)
    acc = jnp.dot(x_ref[...], w_ref[...], preferred_element_type=jnp.float32)
    o_ref[...] = (acc + b_ref[...].astype(jnp.float32)).astype(o_ref.dtype)


def _add_matmul_bias_kernel(a_ref, p_ref, w_ref, b_ref, o_ref):
    # o = (a + p) @ w + b  — fuses "out = out + pos_emb(out)" with project_out
    s = (a_ref[...].astype(jnp.float32) + p_ref[...].astype(jnp.float32)).astype(a_ref.dtype)
    acc = jnp.dot(s, w_ref[...], preferred_element_type=jnp.float32)
    o_ref[...] = (acc + b_ref[...].astype(jnp.float32)).astype(o_ref.dtype)


def _make_dwconv_nhwc_kernel(H, W, C, apply_gelu):
    def kernel(x_ref, w_ref, b_ref, o_ref):
        # x: (1, H, W, C) channels-last, w: (3, 3, C), b: (1, 1, C) -> o: (1, H, W, C)
        x = x_ref[0].astype(jnp.float32)                        # (H, W, C)
        # Build the zero halo in VMEM (no padded HBM copy / extra HBM traffic).
        zrow = jnp.zeros((1, W, C), jnp.float32)
        xp = jnp.concatenate([zrow, x, zrow], axis=0)           # (H+2, W, C)
        zcol = jnp.zeros((H + 2, 1, C), jnp.float32)
        xp = jnp.concatenate([zcol, xp, zcol], axis=1)          # (H+2, W+2, C)
        acc = jnp.zeros((H, W, C), jnp.float32)
        for di in range(3):
            for dj in range(3):
                acc = acc + w_ref[di, dj].astype(jnp.float32) * xp[di:di + H, dj:dj + W, :]
        acc = acc + b_ref[...].astype(jnp.float32)
        if apply_gelu:
            acc = jax.nn.gelu(acc, approximate=False)           # exact GELU (erf), matches nn.GELU()
        o_ref[0] = acc.astype(o_ref.dtype)
    return kernel


def _make_attn_kernel(C, num_heads):
    ch = C // num_heads

    def kernel(temp_ref, qkv_ref, o_ref):
        # One batch per grid step; all heads processed in this step.
        # qkv tile: (1, HW, 3C) channels-last.  temp: (num_heads,) in SMEM.
        qkv = qkv_ref[0].astype(jnp.float32)                    # (HW, 3C)
        in_dt = qkv_ref.dtype
        outs = []
        for h in range(num_heads):
            q = qkv[:, h * ch:(h + 1) * ch]                     # (HW, ch)
            k = qkv[:, C + h * ch:C + (h + 1) * ch]
            v = qkv[:, 2 * C + h * ch:2 * C + (h + 1) * ch]
            # F.normalize(dim=-1) in the (head, c, hw) view == normalize over tokens here.
            # x / max(||x||, 1e-12)  ==  x * rsqrt(max(sum(x^2), 1e-24))   (EUP rsqrt)
            qn = q * lax.rsqrt(jnp.maximum(jnp.sum(q * q, axis=0, keepdims=True), 1e-24))
            kn = k * lax.rsqrt(jnp.maximum(jnp.sum(k * k, axis=0, keepdims=True), 1e-24))
            # attn[i, j] = sum_n qn[n, i] * kn[n, j]   -> (ch, ch)
            attn = lax.dot_general(qn.astype(in_dt), kn.astype(in_dt),
                                   (((0,), (0,)), ((), ())),
                                   preferred_element_type=jnp.float32)
            attn = attn * temp_ref[h]
            attn = attn - jnp.max(attn, axis=-1, keepdims=True)
            e = jnp.exp(attn)
            p = e * pl.reciprocal(jnp.sum(e, axis=-1, keepdims=True), approx=True)
            # out[n, i] = sum_j attn[i, j] * v[n, j]   -> (HW, ch), channels-last
            out_h = lax.dot_general(v.astype(in_dt), p.astype(in_dt),
                                    (((1,), (1,)), ((), ())),
                                    preferred_element_type=jnp.float32)
            outs.append(out_h)
        o_ref[0] = jnp.concatenate(outs, axis=-1).astype(o_ref.dtype)
    return kernel


# ---------------- Pallas wrappers ----------------

def _pick_row_tile(M, max_tile=1024):
    """Largest power-of-two divisor of M up to max_tile (pipelined M tiling)."""
    best = None
    for cand in (8, 16, 32, 64, 128, 256, 512, 1024):
        if cand <= max_tile and M % cand == 0:
            best = cand
    return best if best is not None else M


def _matmul_bias(x2, wT, brow):
    M, K = x2.shape
    N = wT.shape[1]
    tm = _pick_row_tile(M)
    return pl.pallas_call(
        _matmul_bias_kernel,
        out_shape=jax.ShapeDtypeStruct((M, N), x2.dtype),
        grid=(M // tm,),
        in_specs=[pl.BlockSpec((tm, K), lambda i: (i, 0)),
                  pl.BlockSpec((K, N), lambda i: (0, 0)),
                  pl.BlockSpec((1, N), lambda i: (0, 0))],
        out_specs=pl.BlockSpec((tm, N), lambda i: (i, 0)),
        compiler_params=pltpu.CompilerParams(
            dimension_semantics=("parallel",),
            vmem_limit_bytes=_VMEM_LIMIT),
    )(x2, wT, brow)


def _add_matmul_bias(a2, p2, wT, brow):
    M, K = a2.shape
    N = wT.shape[1]
    tm = _pick_row_tile(M)
    return pl.pallas_call(
        _add_matmul_bias_kernel,
        out_shape=jax.ShapeDtypeStruct((M, N), a2.dtype),
        grid=(M // tm,),
        in_specs=[pl.BlockSpec((tm, K), lambda i: (i, 0)),
                  pl.BlockSpec((tm, K), lambda i: (i, 0)),
                  pl.BlockSpec((K, N), lambda i: (0, 0)),
                  pl.BlockSpec((1, N), lambda i: (0, 0))],
        out_specs=pl.BlockSpec((tm, N), lambda i: (i, 0)),
        compiler_params=pltpu.CompilerParams(
            dimension_semantics=("parallel",),
            vmem_limit_bytes=_VMEM_LIMIT),
    )(a2, p2, wT, brow)


def _dwconv3x3_nhwc(x, w_hwc, b_row, apply_gelu=False):
    # x: (B, H, W, C) channels-last, w_hwc: (3, 3, C), b_row: (1, 1, C)
    # TODO(synk): for very large H*W*C stages, additionally tile over row bands /
    # channel groups instead of one full image per grid step.
    B, H, W, C = x.shape
    kernel = _make_dwconv_nhwc_kernel(H, W, C, apply_gelu)
    return pl.pallas_call(
        kernel,
        out_shape=jax.ShapeDtypeStruct((B, H, W, C), x.dtype),
        grid=(B,),
        in_specs=[pl.BlockSpec((1, H, W, C), lambda b: (b, 0, 0, 0)),
                  pl.BlockSpec((3, 3, C), lambda b: (0, 0, 0)),
                  pl.BlockSpec((1, 1, C), lambda b: (0, 0, 0))],
        out_specs=pl.BlockSpec((1, H, W, C), lambda b: (b, 0, 0, 0)),
        compiler_params=pltpu.CompilerParams(
            dimension_semantics=("parallel",),
            vmem_limit_bytes=_VMEM_LIMIT),
    )(x, w_hwc, b_row)


def _attention_core_cl(qkv_flat, temperature, num_heads):
    # qkv_flat: (B, HW, 3C) channels-last; temperature: (num_heads,) in SMEM.
    B, HW, C3 = qkv_flat.shape
    C = C3 // 3
    kernel = _make_attn_kernel(C, num_heads)
    return pl.pallas_call(
        kernel,
        out_shape=jax.ShapeDtypeStruct((B, HW, C), qkv_flat.dtype),
        grid=(B,),
        in_specs=[pl.BlockSpec(memory_space=pltpu.MemorySpace.SMEM),
                  pl.BlockSpec((1, HW, C3), lambda b: (b, 0, 0))],
        out_specs=pl.BlockSpec((1, HW, C), lambda b: (b, 0, 0)),
        compiler_params=pltpu.CompilerParams(
            dimension_semantics=("parallel",),
            vmem_limit_bytes=_VMEM_LIMIT),
    )(temperature, qkv_flat)


# ---------------- Parameter preparation (done once, not per forward) ----------------

def prepare_params(p):
    C = p["W_proj"].shape[0]
    return {
        "W_qkv_T": jnp.transpose(p["W_qkv"]),            # (C, 3C)  weight-stationary layout
        "b_qkv_row": p["b_qkv"][None, :],                # (1, 3C)
        "W_dw_hwc": jnp.transpose(p["W_dw"], (1, 2, 0)),  # (3, 3, 3C) channels-last taps
        "b_dw_row": p["b_dw"][None, None, :],            # (1, 1, 3C)
        "temperature": p["temperature"],                 # (num_heads,)
        "W_pe1_hwc": jnp.transpose(p["W_pe1"], (1, 2, 0)),
        "W_pe2_hwc": jnp.transpose(p["W_pe2"], (1, 2, 0)),
        "b_pe_zero": jnp.zeros((1, 1, C), p["W_pe1"].dtype),
        "W_proj_T": jnp.transpose(p["W_proj"]),          # (C, C)
        "b_proj_row": p["b_proj"][None, :],              # (1, C)
    }


# ---------------- Full forward (glue + Pallas hot paths) ----------------

def attention_forward(x, kparams, num_heads):
    """x: (B, C, H, W) NCHW (module interface); kparams from prepare_params."""
    b, c, h, w = x.shape
    hw = h * w
    # single relayout into the channels-last working layout
    x_cl = jnp.transpose(x, (0, 2, 3, 1))                       # (B, H, W, C)
    # qkv 1x1 conv (M-tiled matmul)
    qkv2 = _matmul_bias(x_cl.reshape(b * hw, c), kparams["W_qkv_T"], kparams["b_qkv_row"])
    # qkv depthwise 3x3 conv, channels-last
    qkv = _dwconv3x3_nhwc(qkv2.reshape(b, h, w, 3 * c),
                          kparams["W_dw_hwc"], kparams["b_dw_row"], apply_gelu=False)
    # channel attention: all heads per batch in one grid step, output stays channels-last
    out = _attention_core_cl(qkv.reshape(b, hw, 3 * c), kparams["temperature"], num_heads)
    out_img = out.reshape(b, h, w, c)
    # pos_emb: dwconv -> GELU -> dwconv (no bias), channels-last
    p1 = _dwconv3x3_nhwc(out_img, kparams["W_pe1_hwc"], kparams["b_pe_zero"], apply_gelu=True)
    p2 = _dwconv3x3_nhwc(p1, kparams["W_pe2_hwc"], kparams["b_pe_zero"], apply_gelu=False)
    # (out + pos_emb) fused with project_out 1x1 conv (M-tiled matmul)
    y2 = _add_matmul_bias(out.reshape(b * hw, c), p2.reshape(b * hw, c),
                          kparams["W_proj_T"], kparams["b_proj_row"])
    # single relayout back to NCHW at the module boundary
    return jnp.transpose(y2.reshape(b, h, w, c), (0, 3, 1, 2))


# ---------------- Pure-JAX reference (for verification) ----------------

def reference_forward(x, params, num_heads):
    b, c, h, w = x.shape
    hw = h * w
    dn = ("NCHW", "OIHW", "NCHW")
    qkv = jnp.einsum("bchw,oc->bohw", x, params["W_qkv"]) + params["b_qkv"][None, :, None, None]
    qkv = lax.conv_general_dilated(qkv, params["W_dw"][:, None, :, :], (1, 1),
                                   ((1, 1), (1, 1)), dimension_numbers=dn,
                                   feature_group_count=3 * c) + params["b_dw"][None, :, None, None]
    q, k, v = jnp.split(qkv, 3, axis=1)
    q = q.reshape(b, num_heads, c // num_heads, hw)
    k = k.reshape(b, num_heads, c // num_heads, hw)
    v = v.reshape(b, num_heads, c // num_heads, hw)
    qn = q / jnp.maximum(jnp.linalg.norm(q, axis=-1, keepdims=True), 1e-12)
    kn = k / jnp.maximum(jnp.linalg.norm(k, axis=-1, keepdims=True), 1e-12)
    attn = jnp.einsum("bhcn,bhdn->bhcd", qn, kn) * params["temperature"][None, :, None, None]
    attn = jax.nn.softmax(attn, axis=-1)
    out = jnp.einsum("bhcd,bhdn->bhcn", attn, v).reshape(b, c, h, w)
    p1 = lax.conv_general_dilated(out, params["W_pe1"][:, None, :, :], (1, 1),
                                  ((1, 1), (1, 1)), dimension_numbers=dn,
                                  feature_group_count=c)
    p1 = jax.nn.gelu(p1, approximate=False)
    p2 = lax.conv_general_dilated(p1, params["W_pe2"][:, None, :, :], (1, 1),
                                  ((1, 1), (1, 1)), dimension_numbers=dn,
                                  feature_group_count=c)
    out = out + p2
    out = jnp.einsum("bchw,oc->bohw", out, params["W_proj"]) + params["b_proj"][None, :, None, None]
    return out


if __name__ == "__main__":
    B, DIM, NUM_HEADS, H, W = 2, 16, 4, 8, 8

    key = jax.random.PRNGKey(0)
    kx, *ks = jax.random.split(key, 9)
    f32 = jnp.float32
    params = {
        "W_qkv": jax.random.normal(ks[0], (3 * DIM, DIM), f32) * 0.15,
        "b_qkv": jax.random.normal(ks[1], (3 * DIM,), f32) * 0.05,
        "W_dw": jax.random.normal(ks[2], (3 * DIM, 3, 3), f32) * 0.15,
        "b_dw": jax.random.normal(ks[3], (3 * DIM,), f32) * 0.05,
        # nn.Parameter(torch.ones(...)) in the module; varied here so it is exercised
        "temperature": 0.5 + 0.25 * jnp.arange(NUM_HEADS, dtype=f32),
        "W_pe1": jax.random.normal(ks[4], (DIM, 3, 3), f32) * 0.15,
        "W_pe2": jax.random.normal(ks[5], (DIM, 3, 3), f32) * 0.15,
        "W_proj": jax.random.normal(ks[6], (DIM, DIM), f32) * 0.15,
        "b_proj": jax.random.normal(ks[7], (DIM,), f32) * 0.05,
    }
    x = jax.random.normal(kx, (B, DIM, H, W), f32)

    kparams = prepare_params(params)          # one-time kernel-layout weight prep

    y = attention_forward(x, kparams, NUM_HEADS)
    y = jax.block_until_ready(y)

    y_ref = jax.block_until_ready(reference_forward(x, params, NUM_HEADS))
    max_diff = float(jnp.max(jnp.abs(y - y_ref)))
    assert y.shape == (B, DIM, H, W), y.shape
    assert max_diff < 3e-2, f"mismatch vs reference: {max_diff}"

    print("KERNEL_OK")
</pallas_src>

<mosaic_0001>
module attributes {stable_mosaic.version = 11 : i64} {
  func.func @_matmul_bias_kernel(%arg0: i32, %arg1: memref<128x16xf32, #tpu.memory_space<vmem>>, %arg2: memref<16x48xf32, #tpu.memory_space<vmem>>, %arg3: memref<1x48xf32, #tpu.memory_space<vmem>>, %arg4: memref<128x48xf32, #tpu.memory_space<vmem>>) attributes {dimension_semantics = [#tpu.dimension_semantics<parallel>], iteration_bounds = array<i64: 1>, scalar_prefetch = 0 : i64, scratch_operands = 0 : i64, tpu.core_type = #tpu.core_type<tc>, window_params = [{transform_indices = @transform_0, window_bounds = array<i64: 128, 16>}, {pipeline_mode = #tpu.pipeline_mode<synchronous>, transform_indices = @transform_1, window_bounds = array<i64: 16, 48>}, {pipeline_mode = #tpu.pipeline_mode<synchronous>, transform_indices = @transform_2, window_bounds = array<i64: 1, 48>}, {transform_indices = @transform_3, window_bounds = array<i64: 128, 48>}]} {
    %c0 = arith.constant 0 : index
    %c0_0 = arith.constant 0 : index
    %0 = vector.load %arg1[%c0, %c0_0] : memref<128x16xf32, #tpu.memory_space<vmem>>, vector<128x16xf32>
    %c0_1 = arith.constant 0 : index
    %c0_2 = arith.constant 0 : index
    %1 = vector.load %arg2[%c0_1, %c0_2] : memref<16x48xf32, #tpu.memory_space<vmem>>, vector<16x48xf32>
    %cst = arith.constant dense<0.000000e+00> : vector<128x48xf32>
    %2 = tpu.matmul %0, %1, %cst {dimension_numbers = #tpu.dot_dimension_numbers<[1], [0], [0], [1], [0, 0, 1, 1], [], []>} : vector<128x16xf32>, vector<16x48xf32>, vector<128x48xf32> -> vector<128x48xf32>
    %c0_3 = arith.constant 0 : index
    %c0_4 = arith.constant 0 : index
    %3 = vector.load %arg3[%c0_3, %c0_4] : memref<1x48xf32, #tpu.memory_space<vmem>>, vector<1x48xf32>
    %4 = vector.broadcast %3 : vector<1x48xf32> to vector<128x48xf32>
    %5 = arith.addf %2, %4 : vector<128x48xf32>
    %c0_5 = arith.constant 0 : index
    %c0_6 = arith.constant 0 : index
    %6 = vector.load %arg4[%c0_5, %c0_6] : memref<128x48xf32, #tpu.memory_space<vmem>>, vector<128x48xf32>
    tpu.vector_store %arg4[%c0_5, %c0_6], %5 {strides = array<i32>} : memref<128x48xf32, #tpu.memory_space<vmem>>, vector<128x48xf32>,
    return
  }
  func.func @transform_0(%arg0: i32) -> (i32, i32) {
    %c0_i32 = arith.constant 0 : i32
    %c0_i32_0 = arith.constant 0 : i32
    return %arg0, %c0_i32 : i32, i32
  }
  func.func @transform_1(%arg0: i32) -> (i32, i32) {
    %c0_i32 = arith.constant 0 : i32
    %c0_i32_0 = arith.constant 0 : i32
    %c0_i32_1 = arith.constant 0 : i32
    return %c0_i32, %c0_i32_0 : i32, i32
  }
  func.func @transform_2(%arg0: i32) -> (i32, i32) {
    %c0_i32 = arith.constant 0 : i32
    %c0_i32_0 = arith.constant 0 : i32
    %c0_i32_1 = arith.constant 0 : i32
    return %c0_i32, %c0_i32_0 : i32, i32
  }
  func.func @transform_3(%arg0: i32) -> (i32, i32) {
    %c0_i32 = arith.constant 0 : i32
    %c0_i32_0 = arith.constant 0 : i32
    return %arg0, %c0_i32 : i32, i32
  }
}

</mosaic_0001>

<llo_original>
// kernel: tpu_custom_call.1
$region0: #{tpu_custom_call.1}
  #allocation0 [shape = 'u32[]', space=smem, size = 0x4, offset = 0x4, fixed_abs, tag = 'smem constant byte address 0x4 - core index']
  #allocation1 [shape = 'u32[144,128]{1,0:T(1,128)}', space=vmem, size = 0x12000, scoped, tag = 'internal scratch']
  %s0 = inlined_call_operand.hbm [shape: f32[128,16], index: 0, kind: input, shape index: {}]
  %s1 = inlined_call_operand.hbm [shape: f32[16,48], index: 1, kind: input, shape index: {}]
  %s2 = inlined_call_operand.hbm [shape: f32[1,48], index: 2, kind: input, shape index: {}]
  %s3 = inlined_call_operand.hbm [shape: f32[128,48], index: 3, kind: output, shape index: {}]
  %s4 = sld [smem:[#allocation0]]
  $region34: #{tpu_custom_call.1} parent=0
    _
  %s6 = ssub.s32 1, %s4
  %s7 = scalar_select 0, %s6, %s4
  $region1: #{tpu_custom_call.1} parent=0
    #allocation2 [shape = 'u8[65536]{0}', space=vmem, size = 0x10000, scoped, tag = 'input window, operand 0, single buffered']
    #allocation3 [shape = 's32[1]{0}', space=sflag, size = 0x4, scoped, tag = 'scoped memory for tpu_custom_call.1']
    #allocation4 [shape = 's32[1]{0}', space=sflag, size = 0x4, scoped, tag = 'scoped memory for tpu_custom_call.1']
    #allocation5 [shape = 'u8[8192]{0}', space=vmem, size = 0x2000, scoped, tag = 'input window, operand 1, single buffered']
    #allocation6 [shape = 's32[1]{0}', space=sflag, size = 0x4, scoped, tag = 'scoped memory for tpu_custom_call.1']
    #allocation7 [shape = 'u8[512]{0}', space=vmem, size = 0x400, scoped, tag = 'input window, operand 2, single buffered']
    #allocation8 [shape = 'u8[65536]{0}', space=vmem, size = 0x10000, scoped, tag = 'output window, operand 0, single buffered']
    %8 = vsyncpa [#allocation3], 0
    %9 = vsyncpa [#allocation6], 0
    %10 = vsyncpa [#allocation4], 0
    // Predicated region
    $region2: #{tpu_custom_call.1} parent=1 // pred_check
      _
    $region3: #{tpu_custom_call.1} parent=1 // pred_check_branch
      %12 = sbr.rel (0) target = $region5
    $region4: #{tpu_custom_call.1} parent=1 // pred_region
      %s14 = ssub.s32 2048, 2048
      %15 = vsyncadd [#allocation3], %s14
      %s16 = sshll.u32 [#allocation2], 4
      %s17 = int_to_ptr.vmem [resolvable:$true] %s16
      %22 = dma.hbm_to_vmem [thread:$0]  %s0, 2048, %s17, [#allocation3], 128, 128, 8
    $region5: #{tpu_custom_call.1} parent=1 // pred_fallthru
      _
    // Predicated region
    $region6: #{tpu_custom_call.1} parent=1 // pred_check
      _
    $region7: #{tpu_custom_call.1} parent=1 // pred_check_branch
      %24 = sbr.rel (0) target = $region9
    $region8: #{tpu_custom_call.1} parent=1 // pred_region
      %s26 = ssub.s32 256, 256
      %27 = vsyncadd [#allocation6], %s26
      %s28 = sshll.u32 [#allocation5], 4
      %s29 = int_to_ptr.vmem [resolvable:$true] %s28
      %34 = dma.hbm_to_vmem [thread:$0]  %s1, 256, %s29, [#allocation6], 128, 128, 8
    $region9: #{tpu_custom_call.1} parent=1 // pred_fallthru
      _
    // Predicated region
    $region10: #{tpu_custom_call.1} parent=1 // pred_check
      _
    $region11: #{tpu_custom_call.1} parent=1 // pred_check_branch
      %36 = sbr.rel (0) target = $region13
    $region12: #{tpu_custom_call.1} parent=1 // pred_region
      %s38 = ssub.s32 16, 16
      %39 = vsyncadd [#allocation6], %s38
      %s41 = sshll.u32 [#allocation7], 4
      %s42 = int_to_ptr.vmem [resolvable:$true] %s41
      %44 = dma.hbm_to_vmem [thread:$0]  %s2, 16, %s42, [#allocation6]
    $region13: #{tpu_custom_call.1} parent=1 // pred_fallthru
      _
    // Predicated region
    $region14: #{tpu_custom_call.1} parent=1 // pred_check
      _
    $region15: #{tpu_custom_call.1} parent=1 // pred_check_branch
      %46 = sbr.rel (0) target = $region17
    $region16: #{tpu_custom_call.1} parent=1 // pred_region
      %47 = dma.done [#allocation3], 2048
    $region17: #{tpu_custom_call.1} parent=1 // pred_fallthru
      _
    // Predicated region
    $region18: #{tpu_custom_call.1} parent=1 // pred_check
      _
    $region19: #{tpu_custom_call.1} parent=1 // pred_check_branch
      %49 = sbr.rel (0) target = $region21
    $region20: #{tpu_custom_call.1} parent=1 // pred_region
      %50 = dma.done [#allocation6], 256
    $region21: #{tpu_custom_call.1} parent=1 // pred_fallthru
      _
    // Predicated region
    $region22: #{tpu_custom_call.1} parent=1 // pred_check
      _
    $region23: #{tpu_custom_call.1} parent=1 // pred_check_branch
      %52 = sbr.rel (0) target = $region25
    $region24: #{tpu_custom_call.1} parent=1 // pred_region
      %53 = dma.done [#allocation6], 16
    $region25: #{tpu_custom_call.1} parent=1 // pred_fallthru
      _
    %v54 = vld [vmem:[#allocation2] sm:$0xff]
    %v55 = vld [vmem:[#allocation2 + $0x8] sm:$0xff]
    %v56 = vld [vmem:[#allocation2 + $0x10] sm:$0xff]
    %v57 = vld [vmem:[#allocation2 + $0x18] sm:$0xff]
    %v58 = vld [vmem:[#allocation2 + $0x20] sm:$0xff]
    %v59 = vld [vmem:[#allocation2 + $0x28] sm:$0xff]
    %v60 = vld [vmem:[#allocation2 + $0x30] sm:$0xff]
    %v61 = vld [vmem:[#allocation2 + $0x38] sm:$0xff]
    %v62 = vld [vmem:[#allocation2 + $0x40] sm:$0xff]
    %v63 = vld [vmem:[#allocation2 + $0x48] sm:$0xff]
    %v64 = vld [vmem:[#allocation2 + $0x50] sm:$0xff]
    %v65 = vld [vmem:[#allocation2 + $0x58] sm:$0xff]
    %v66 = vld [vmem:[#allocation2 + $0x60] sm:$0xff]
    %v67 = vld [vmem:[#allocation2 + $0x68] sm:$0xff]
    %v68 = vld [vmem:[#allocation2 + $0x70] sm:$0xff]
    %v69 = vld [vmem:[#allocation2 + $0x78] sm:$0xff]
    %v70 = vld [vmem:[#allocation5] sm:$0xff]
    %v71 = vld [vmem:[#allocation5 + $0x8] sm:$0xff]
    %v72 = vld [vmem:[#allocation7] sm:$0x1]
    %v74 = vlaneseq
    %v75 = vshrl.u32 %v74, 7
    %v76 = vsub.s32 0, %v75
    %v77 = vrot.slane %v72, %v76
    %vm79 = vcmask 130048
    %v81 = vsel %vm79, %v54, 0
    %v84 = vsel %vm79, %v55, 0
    %v87 = vsel %vm79, %v56, 0
    %v90 = vsel %vm79, %v57, 0
    %v93 = vsel %vm79, %v58, 0
    %v96 = vsel %vm79, %v59, 0
    %v99 = vsel %vm79, %v60, 0
    %v102 = vsel %vm79, %v61, 0
    %v105 = vsel %vm79, %v62, 0
    %v108 = vsel %vm79, %v63, 0
    %v111 = vsel %vm79, %v64, 0
    %v114 = vsel %vm79, %v65, 0
    %v117 = vsel %vm79, %v66, 0
    %v120 = vsel %vm79, %v67, 0
    %v123 = vsel %vm79, %v68, 0
    %v126 = vsel %vm79, %v69, 0
    %128 = vmatprep.subr.mxu0 0.0
    %129 = vmatpush1.msra.mxu0 %v70
    %130 = vmatprep.subr.mxu0 0.0
    %131 = vmatpush1.msra.mxu0 %v71
    %132 = vmatprep.subr.mxu0 0.0
    %133 = vmatpush1.msra.mxu0 0.0
    %134 = vmatprep.subr.mxu0 0.0
    %135 = vmatpush1.msra.mxu0 0.0
    %136 = vmatprep.subr.mxu0 0.0
    %137 = vmatpush1.msra.mxu0 0.0
    %138 = vmatprep.subr.mxu0 0.0
    %139 = vmatpush1.msra.mxu0 0.0
    %140 = vmatprep.subr.mxu0 0.0
    %141 = vmatpush1.msra.mxu0 0.0
    %142 = vmatprep.subr.mxu0 0.0
    %143 = vmatpush1.msra.mxu0 0.0
    %144 = vmatprep.subr.mxu0 0.0
    %145 = vmatpush1.msra.mxu0 0.0
    %146 = vmatprep.subr.mxu0 0.0
    %147 = vmatpush1.msra.mxu0 0.0
    %148 = vmatprep.subr.mxu0 0.0
    %149 = vmatpush1.msra.mxu0 0.0
    %150 = vmatprep.subr.mxu0 0.0
    %151 = vmatpush1.msra.mxu0 0.0
    %152 = vmatprep.subr.mxu0 0.0
    %153 = vmatpush1.msra.mxu0 0.0
    %154 = vmatprep.subr.mxu0 0.0
    %155 = vmatpush1.msra.mxu0 0.0
    %156 = vmatprep.subr.mxu0 0.0
    %157 = vmatpush1.msra.mxu0 0.0
    %158 = vmatprep.subr.mxu0 0.0
    %159 = vmatpush1.msra.mxu0 0.0
    %160 = vmatprep.subr.mxu0 0.0
    %161 = vmatpush1.msra.mxu0 0.0
    %162 = vmatprep.subr.mxu0 0.0
    %163 = vmatpush1.msra.mxu0 0.0
    %164 = vmatprep.subr.mxu0 0.0
    %165 = vmatpush1.msra.mxu0 0.0
    %166 = vmatprep.subr.mxu0 0.0
    %167 = vmatpush1.msra.mxu0 0.0
    %168 = vmatprep.subr.mxu0 0.0
    %169 = vmatpush1.msra.mxu0 0.0
    %170 = vmatprep.subr.mxu0 0.0
    %171 = vmatpush1.msra.mxu0 0.0
    %172 = vmatprep.subr.mxu0 0.0
    %173 = vmatpush1.msra.mxu0 0.0
    %174 = vmatprep.subr.mxu0 0.0
    %175 = vmatpush1.msra.mxu0 0.0
    %176 = vmatprep.subr.mxu0 0.0
    %177 = vmatpush1.msra.mxu0 0.0
    %178 = vmatprep.subr.mxu0 0.0
    %179 = vmatpush1.msra.mxu0 0.0
    %180 = vmatprep.subr.mxu0 0.0
    %181 = vmatpush1.msra.mxu0 0.0
    %182 = vmatprep.subr.mxu0 0.0
    %183 = vmatpush1.msra.mxu0 0.0
    %184 = vmatprep.subr.mxu0 0.0
    %185 = vmatpush1.msra.mxu0 0.0
    %186 = vmatprep.subr.mxu0 0.0
    %187 = vmatpush1.msra.mxu0 0.0
    %188 = vmatprep.subr.mxu0 0.0
    %189 = vmatpush1.msra.mxu0 0.0
    %190 = vmatprep.subr.mxu0 0.0
    %191 = vmatpush1.msra.mxu0 0.0
    %192 = vmatprep.mubr.f32.mxu0 0.0
    %193 = vmatmul.mubr.f32.gmra.mrb[0].mxu0 %v81
    %v194 = vpop.f32.mrb[0].mxu0
    %v195 = vadd.f32 %v77, %v194
    %v196 = vpop.f32.mrb[0].mxu0
    %197 = vmatprep.mubr.f32.mxu0 0.0
    %198 = vmatmul.mubr.f32.gmra.mrb[0].mxu0 %v84
    %v199 = vpop.f32.mrb[0].mxu0
    %v200 = vadd.f32 %v77, %v199
    %v201 = vpop.f32.mrb[0].mxu0
    %202 = vmatprep.mubr.f32.mxu0 0.0
    %203 = vmatmul.mubr.f32.gmra.mrb[0].mxu0 %v87
    %v204 = vpop.f32.mrb[0].mxu0
    %v205 = vadd.f32 %v77, %v204
    %v206 = vpop.f32.mrb[0].mxu0
    %207 = vmatprep.mubr.f32.mxu0 0.0
    %208 = vmatmul.mubr.f32.gmra.mrb[0].mxu0 %v90
    %v209 = vpop.f32.mrb[0].mxu0
    %v210 = vadd.f32 %v77, %v209
    %v211 = vpop.f32.mrb[0].mxu0
    %212 = vmatprep.mubr.f32.mxu0 0.0
    %213 = vmatmul.mubr.f32.gmra.mrb[0].mxu0 %v93
    %v214 = vpop.f32.mrb[0].mxu0
    %v215 = vadd.f32 %v77, %v214
    %v216 = vpop.f32.mrb[0].mxu0
    %217 = vmatprep.mubr.f32.mxu0 0.0
    %218 = vmatmul.mubr.f32.gmra.mrb[0].mxu0 %v96
    %v219 = vpop.f32.mrb[0].mxu0
    %v220 = vadd.f32 %v77, %v219
    %v221 = vpop.f32.mrb[0].mxu0
    %222 = vmatprep.mubr.f32.mxu0 0.0
    %223 = vmatmul.mubr.f32.gmra.mrb[0].mxu0 %v99
    %v224 = vpop.f32.mrb[0].mxu0
    %v225 = vadd.f32 %v77, %v224
    %v226 = vpop.f32.mrb[0].mxu0
    %227 = vmatprep.mubr.f32.mxu0 0.0
    %228 = vmatmul.mubr.f32.gmra.mrb[0].mxu0 %v102
    %v229 = vpop.f32.mrb[0].mxu0
    %v230 = vadd.f32 %v77, %v229
    %v231 = vpop.f32.mrb[0].mxu0
    %232 = vmatprep.mubr.f32.mxu0 0.0
    %233 = vmatmul.mubr.f32.gmra.mrb[0].mxu0 %v105
    %v234 = vpop.f32.mrb[0].mxu0
    %v235 = vadd.f32 %v77, %v234
    %v236 = vpop.f32.mrb[0].mxu0
    %237 = vmatprep.mubr.f32.mxu0 0.0
    %238 = vmatmul.mubr.f32.gmra.mrb[0].mxu0 %v108
    %v239 = vpop.f32.mrb[0].mxu0
    %v240 = vadd.f32 %v77, %v239
    %v241 = vpop.f32.mrb[0].mxu0
    %242 = vmatprep.mubr.f32.mxu0 0.0
    %243 = vmatmul.mubr.f32.gmra.mrb[0].mxu0 %v111
    %v244 = vpop.f32.mrb[0].mxu0
    %v245 = vadd.f32 %v77, %v244
    %v246 = vpop.f32.mrb[0].mxu0
    %247 = vmatprep.mubr.f32.mxu0 0.0
    %248 = vmatmul.mubr.f32.gmra.mrb[0].mxu0 %v114
    %v249 = vpop.f32.mrb[0].mxu0
    %v250 = vadd.f32 %v77, %v249
    %v251 = vpop.f32.mrb[0].mxu0
    %252 = vmatprep.mubr.f32.mxu0 0.0
    %253 = vmatmul.mubr.f32.gmra.mrb[0].mxu0 %v117
    %v254 = vpop.f32.mrb[0].mxu0
    %v255 = vadd.f32 %v77, %v254
    %v256 = vpop.f32.mrb[0].mxu0
    %257 = vmatprep.mubr.f32.mxu0 0.0
    %258 = vmatmul.mubr.f32.gmra.mrb[0].mxu0 %v120
    %v259 = vpop.f32.mrb[0].mxu0
    %v260 = vadd.f32 %v77, %v259
    %v261 = vpop.f32.mrb[0].mxu0
    %262 = vmatprep.mubr.f32.mxu0 0.0
    %263 = vmatmul.mubr.f32.gmra.mrb[0].mxu0 %v123
    %v264 = vpop.f32.mrb[0].mxu0
    %v265 = vadd.f32 %v77, %v264
    %v266 = vpop.f32.mrb[0].mxu0
    %267 = vmatprep.mubr.f32.mxu0 0.0
    %268 = vmatmul.mubr.f32.gmra.mrb[0].mxu0 %v126
    %v269 = vpop.f32.mrb[0].mxu0
    %v270 = vadd.f32 %v77, %v269
    %v271 = vpop.f32.mrb[0].mxu0
    %272 = vdwg.mxu0
    %vm273 = vcmask 392192
    %274 = vst.msk [vmem:[#allocation8] sm:$0xff] %vm273, %v195
    %275 = vst.msk [vmem:[#allocation8 + $0x8] sm:$0xff] %vm273, %v200
    %276 = vst.msk [vmem:[#allocation8 + $0x10] sm:$0xff] %vm273, %v205
    %277 = vst.msk [vmem:[#allocation8 + $0x18] sm:$0xff] %vm273, %v210
    %278 = vst.msk [vmem:[#allocation8 + $0x20] sm:$0xff] %vm273, %v215
    %279 = vst.msk [vmem:[#allocation8 + $0x28] sm:$0xff] %vm273, %v220
    %280 = vst.msk [vmem:[#allocation8 + $0x30] sm:$0xff] %vm273, %v225
    %281 = vst.msk [vmem:[#allocation8 + $0x38] sm:$0xff] %vm273, %v230
    %282 = vst.msk [vmem:[#allocation8 + $0x40] sm:$0xff] %vm273, %v235
    %283 = vst.msk [vmem:[#allocation8 + $0x48] sm:$0xff] %vm273, %v240
    %284 = vst.msk [vmem:[#allocation8 + $0x50] sm:$0xff] %vm273, %v245
    %285 = vst.msk [vmem:[#allocation8 + $0x58] sm:$0xff] %vm273, %v250
    %286 = vst.msk [vmem:[#allocation8 + $0x60] sm:$0xff] %vm273, %v255
    %287 = vst.msk [vmem:[#allocation8 + $0x68] sm:$0xff] %vm273, %v260
    %288 = vst.msk [vmem:[#allocation8 + $0x70] sm:$0xff] %vm273, %v265
    %289 = vst.msk [vmem:[#allocation8 + $0x78] sm:$0xff] %vm273, %v270
    // Predicated region
    $region26: #{tpu_custom_call.1} parent=1 // pred_check
      _
    $region27: #{tpu_custom_call.1} parent=1 // pred_check_branch
      %291 = sbr.rel (0) target = $region29
    $region28: #{tpu_custom_call.1} parent=1 // pred_region
      %s293 = ssub.s32 2048, 2048
      %294 = vsyncadd [#allocation4], %s293
      %s295 = sshll.u32 [#allocation8], 4
      %s296 = int_to_ptr.vmem [resolvable:$true] %s295
      %301 = dma.vmem_to_hbm [thread:$0]  %s296, 2048, %s3, [#allocation4], 128, 128, 8
    $region29: #{tpu_custom_call.1} parent=1 // pred_fallthru
      _
    // Predicated region
    $region30: #{tpu_custom_call.1} parent=1 // pred_check
      _
    $region31: #{tpu_custom_call.1} parent=1 // pred_check_branch
      %303 = sbr.rel (0) target = $region33
    $region32: #{tpu_custom_call.1} parent=1 // pred_region
      %304 = dma.done [#allocation4], 2048
    $region33: #{tpu_custom_call.1} parent=1 // pred_fallthru
      _
    %305 = vsyncpa [#allocation3], 1
    %306 = vsyncpa [#allocation6], 1
    %307 = vsyncpa [#allocation4], 1

</llo_original>
